<compile_context>
chip_gen: v5e
topology: v5e:2x2
jax: 0.10.0
libtpu: 0.0.40
codegen_flags: <defaults>
</compile_context>

<pallas_src>
import functools

import jax
import jax.numpy as jnp
from jax.experimental import pallas as pl
from jax.experimental.pallas import tpu as pltpu


def _round_up(x, m):
    return ((x + m - 1) // m) * m


def splade_fused_kernel(h_ref, madd_ref, w_ref, b_ref, out_ref, *, batch, seq, tile_v):
    """One vocab-tile program.

    h_ref   : (B*S_pad, H)   hidden states, resident in VMEM (compute dtype)
    madd_ref: (B*S_pad, 1)   additive mask, f32 (0.0 valid / -1e30 masked)
    w_ref   : (H, TV)        vocab-projection tile (double-buffered stream)
    b_ref   : (1, V_pad)     bias, resident in VMEM (f32)
    out_ref : (B, TV)        SPLADE values tile (f32, lane-dense)
    """
    # Single MXU matmul per vocab tile: (B*S_pad, H) @ (H, TV), f32 accumulation.
    raw = jnp.dot(h_ref[...], w_ref[...], preferred_element_type=jnp.float32)

    # Additive mask: one vadd over the tile (masked rows pushed to ~-1e30).
    masked = raw + madd_ref[...]

    # Reduce over the (sublane-aligned) sequence BEFORE the transcendental
    # epilogue: log1p(relu(.)) is monotone nondecreasing and maps (-inf,0]->0,
    # and the mask is binary, so max commutes with the epilogue.
    per_batch = jnp.max(masked.reshape(batch, seq, tile_v), axis=1)  # (B, TV)

    # Resident bias: slice the tile's columns out of the full (1, V_pad) block.
    off = pl.multiple_of(pl.program_id(0) * tile_v, tile_v)
    bias = b_ref[:, pl.ds(off, tile_v)]                               # (1, TV)

    out_ref[...] = jnp.log1p(jnp.maximum(per_batch + bias, 0.0)).astype(out_ref.dtype)


def sparse_activation_pallas(hidden, attention_mask, w_vocab, b_vocab, *,
                             tile_v=None, compute_dtype=jnp.bfloat16):
    """values[b, v] = max_s log1p(relu((hidden @ W + b)[b, s, v])) * mask[b, s]."""
    B, S, H = hidden.shape
    V = w_vocab.shape[1]

    # --- pad the sequence to a multiple of 8 (sublane-aligned in-kernel reshape) ---
    S_pad = _round_up(S, 8)
    if S_pad != S:
        hidden = jnp.pad(hidden, ((0, 0), (0, S_pad - S), (0, 0)))
        attention_mask = jnp.pad(attention_mask, ((0, 0), (0, S_pad - S)))

    # --- optional low-precision streaming (f32 MXU accumulation either way) ---
    if compute_dtype is not None:
        hidden = hidden.astype(compute_dtype)
        w_vocab = w_vocab.astype(compute_dtype)

    h_item = jnp.dtype(hidden.dtype).itemsize
    w_item = jnp.dtype(w_vocab.dtype).itemsize

    # --- VMEM budget (per-chip) and tile_v selection ---
    try:
        vmem_cap = int(pltpu.get_tpu_info().vmem_capacity_bytes)
    except Exception:  # pragma: no cover - conservative fallback
        vmem_cap = 128 << 20
    budget = int(vmem_cap * 0.85)  # headroom for compiler scratch / semaphores

    def needed_bytes(tv, vp):
        resident = B * S_pad * H * h_item + B * S_pad * 4 + vp * 4     # hidden + mask + bias
        pipelined = 2 * (H * tv * w_item) + 2 * (B * tv * 4)            # W + out, double-buffered
        return resident + pipelined + (4 << 20)                          # margin

    if tile_v is None:
        cap_tv = max(256, _round_up(V, 256))
        tile_v = 256
        for cand in (2048, 1024, 512, 256):
            cand = min(cand, cap_tv)
            if needed_bytes(cand, _round_up(V, cand)) <= budget:
                tile_v = cand
                break

    # --- pad the vocab dimension up to a multiple of tile_v ---
    v_pad = _round_up(V, tile_v)
    if v_pad != V:
        w_vocab = jnp.pad(w_vocab, ((0, 0), (0, v_pad - V)))
        b_vocab = jnp.pad(b_vocab, (0, v_pad - V))

    hidden2d = hidden.reshape(B * S_pad, H)
    # Additive mask: 0.0 for valid positions, -1e30 for masked / seq-padding rows.
    mask_add = jnp.where(attention_mask > 0, 0.0, -1e30).astype(jnp.float32)
    mask_add = mask_add.reshape(B * S_pad, 1)
    bias2 = b_vocab.reshape(1, v_pad).astype(jnp.float32)

    vmem_limit = int(min(max(needed_bytes(tile_v, v_pad), 32 << 20), budget))

    grid = (v_pad // tile_v,)
    kernel = functools.partial(splade_fused_kernel, batch=B, seq=S_pad, tile_v=tile_v)

    cost = pl.CostEstimate(
        flops=2 * B * S_pad * H * v_pad,
        transcendentals=B * v_pad,
        bytes_accessed=(hidden2d.size * h_item + mask_add.size * 4
                        + w_vocab.size * w_item + bias2.size * 4 + B * v_pad * 4),
    )

    out = pl.pallas_call(
        kernel,
        out_shape=jax.ShapeDtypeStruct((B, v_pad), jnp.float32),
        grid_spec=pltpu.PrefetchScalarGridSpec(
            num_scalar_prefetch=0,
            grid=grid,
            in_specs=[
                # hidden / mask / bias: whole arrays resident in VMEM (single-buffered)
                pl.BlockSpec(memory_space=pltpu.MemorySpace.VMEM),
                pl.BlockSpec(memory_space=pltpu.MemorySpace.VMEM),
                # W: streamed exactly once, tile per grid step (double-buffered)
                pl.BlockSpec((H, tile_v), lambda j: (0, j)),
                pl.BlockSpec(memory_space=pltpu.MemorySpace.VMEM),
            ],
            out_specs=pl.BlockSpec((B, tile_v), lambda j: (0, j)),
        ),
        compiler_params=pltpu.CompilerParams(
            dimension_semantics=("parallel",),
            vmem_limit_bytes=vmem_limit,
        ),
        cost_estimate=cost,
    )(hidden2d, mask_add, w_vocab, bias2)

    return out[:, :V]


def init_params(key, vocab_size, hidden_size):
    """Deterministic synthetic 'transformer' + SPLADE wrapper params."""
    k_emb, k_dw, k_db, k_pw, k_pb = jax.random.split(key, 5)
    return {
        # synthetic transformer: embedding -> dense+tanh -> vocab projection
        "embedding": jax.random.normal(k_emb, (vocab_size, hidden_size), jnp.float32) * 0.02,
        "dense_w": jax.random.normal(k_dw, (hidden_size, hidden_size), jnp.float32) * 0.05,
        "dense_b": jax.random.normal(k_db, (hidden_size,), jnp.float32) * 0.01,
        "proj_w": jax.random.normal(k_pw, (hidden_size, vocab_size), jnp.float32) * 0.5,
        "proj_b": jax.random.normal(k_pb, (vocab_size,), jnp.float32) * 0.1,
        # learnable temperatures (unused in forward, matching the PyTorch module)
        "log_t_ce": jnp.log(jnp.float32(5.0)),
        "log_t_kl": jnp.log(jnp.float32(5.0)),
    }


@functools.partial(jax.jit, static_argnames=("top_k", "compute_dtype"))
def splade_forward(params, input_ids, attention_mask, top_k=64,
                   compute_dtype=jnp.bfloat16):
    # synthetic "transformer model" producing hidden states [B, S, H]
    emb = params["embedding"][input_ids]                            # (B, S, H)
    hidden = jnp.tanh(emb @ params["dense_w"] + params["dense_b"])  # (B, S, H)

    # fused vocab-projection + sparse activation (Pallas hot path)
    values = sparse_activation_pallas(
        hidden, attention_mask, params["proj_w"], params["proj_b"],
        compute_dtype=compute_dtype,
    )                                                               # (B, V)

    # top-k thresholding over the vocab dimension (glue JAX)
    top_values, _ = jax.lax.top_k(values, top_k)
    threshold = top_values[..., -1:]                                # (B, 1)
    values = values * (values >= threshold).astype(values.dtype)
    return values


def reference_forward(params, input_ids, attention_mask, top_k=64):
    """Pure-JAX reference mirroring the PyTorch forward semantics (f32)."""
    emb = params["embedding"][input_ids]
    hidden = jnp.tanh(emb @ params["dense_w"] + params["dense_b"])
    logits = hidden @ params["proj_w"] + params["proj_b"]           # (B, S, V)
    act = jnp.log1p(jnp.maximum(logits, 0.0)) * attention_mask[..., None].astype(jnp.float32)
    values = jnp.max(act, axis=1)                                   # (B, V)
    top_values, _ = jax.lax.top_k(values, top_k)
    threshold = top_values[..., -1:]
    return values * (values >= threshold).astype(values.dtype)


if __name__ == "__main__":
    # S=7 exercises sequence padding (7 -> 8); V=1000 exercises vocab padding (-> 1024).
    B, S, H, V = 2, 7, 128, 1000
    TOP_K = 64

    key = jax.random.PRNGKey(0)
    k_params, k_ids = jax.random.split(key)

    params = init_params(k_params, V, H)
    input_ids = jax.random.randint(k_ids, (B, S), 0, V, dtype=jnp.int32)
    # deterministic attention mask: second example has last 3 positions padded
    attention_mask = jnp.array(
        [[1] * S, [1] * (S - 3) + [0] * 3], dtype=jnp.int32
    )

    # --- exact-path check: f32 streaming vs pure-JAX reference (tight tolerance) ---
    out_f32 = splade_forward(params, input_ids, attention_mask,
                             top_k=TOP_K, compute_dtype=None)
    out_f32 = jax.block_until_ready(out_f32)
    ref = reference_forward(params, input_ids, attention_mask, top_k=TOP_K)
    assert out_f32.shape == (B, V)
    assert jnp.allclose(out_f32, ref, atol=1e-5, rtol=1e-5), "f32 path mismatch vs reference"

    # --- fast-path check: bf16 streaming (default) on the pre-top_k values,
    #     compared against the f32 reference with a bf16-appropriate tolerance ---
    emb = params["embedding"][input_ids]
    hidden = jnp.tanh(emb @ params["dense_w"] + params["dense_b"])
    vals_bf16 = sparse_activation_pallas(
        hidden, attention_mask, params["proj_w"], params["proj_b"],
        compute_dtype=jnp.bfloat16,
    )
    vals_bf16 = jax.block_until_ready(vals_bf16)
    logits = hidden @ params["proj_w"] + params["proj_b"]
    ref_vals = jnp.max(
        jnp.log1p(jnp.maximum(logits, 0.0)) * attention_mask[..., None].astype(jnp.float32),
        axis=1,
    )
    assert vals_bf16.shape == (B, V)
    assert jnp.allclose(vals_bf16, ref_vals, atol=5e-2, rtol=5e-2), "bf16 path mismatch vs reference"

    # --- run the default (bf16 streaming) full forward once ---
    out = splade_forward(params, input_ids, attention_mask, top_k=TOP_K)
    out = jax.block_until_ready(out)
    assert out.shape == (B, V)
    assert bool(jnp.all(jnp.isfinite(out)))

    print("KERNEL_OK")
</pallas_src>

<mosaic_0001>
module attributes {stable_mosaic.version = 11 : i64} {
  func.func @splade_fused_kernel(%arg0: i32, %arg1: memref<16x128xf32, #tpu.memory_space<vmem>>, %arg2: memref<16x1xf32, #tpu.memory_space<vmem>>, %arg3: memref<128x1024xf32, #tpu.memory_space<vmem>>, %arg4: memref<1x1024xf32, #tpu.memory_space<vmem>>, %arg5: memref<2x1024xf32, #tpu.memory_space<vmem>>) attributes {dimension_semantics = [#tpu.dimension_semantics<parallel>], iteration_bounds = array<i64: 1>, scalar_prefetch = 0 : i64, scratch_operands = 0 : i64, tpu.core_type = #tpu.core_type<tc>, window_params = [{pipeline_mode = #tpu.pipeline_mode<synchronous>, transform_indices = @transform_0, window_bounds = array<i64: 16, 128>}, {pipeline_mode = #tpu.pipeline_mode<synchronous>, transform_indices = @transform_1, window_bounds = array<i64: 16, 1>}, {transform_indices = @transform_2, window_bounds = array<i64: 128, 1024>}, {pipeline_mode = #tpu.pipeline_mode<synchronous>, transform_indices = @transform_3, window_bounds = array<i64: 1, 1024>}, {transform_indices = @transform_4, window_bounds = array<i64: 2, 1024>}]} {
    %c0 = arith.constant 0 : index
    %c0_0 = arith.constant 0 : index
    %0 = vector.load %arg1[%c0, %c0_0] : memref<16x128xf32, #tpu.memory_space<vmem>>, vector<16x128xf32>
    %c0_1 = arith.constant 0 : index
    %c0_2 = arith.constant 0 : index
    %1 = vector.load %arg3[%c0_1, %c0_2] : memref<128x1024xf32, #tpu.memory_space<vmem>>, vector<128x1024xf32>
    %cst = arith.constant dense<0.000000e+00> : vector<16x1024xf32>
    %2 = tpu.matmul %0, %1, %cst {dimension_numbers = #tpu.dot_dimension_numbers<[1], [0], [0], [1], [0, 0, 1, 1], [], []>} : vector<16x128xf32>, vector<128x1024xf32>, vector<16x1024xf32> -> vector<16x1024xf32>
    %c0_3 = arith.constant 0 : index
    %c0_4 = arith.constant 0 : index
    %3 = vector.load %arg2[%c0_3, %c0_4] : memref<16x1xf32, #tpu.memory_space<vmem>>, vector<16x1xf32>
    %4 = vector.broadcast %3 : vector<16x1xf32> to vector<16x1024xf32>
    %5 = arith.addf %2, %4 : vector<16x1024xf32>
    %6 = vector.shape_cast %5 : vector<16x1024xf32> to vector<2x8x1024xf32>
    %cst_5 = arith.constant dense<0xFF800000> : vector<2x1024xf32>
    %7 = vector.multi_reduction <maximumf>, %6, %cst_5 [1] : vector<2x8x1024xf32> to vector<2x1024xf32>
    %c1024_i32 = arith.constant 1024 : i32
    %8 = arith.muli %arg0, %c1024_i32 : i32
    %9 = tpu.assume_multiple %8, 1024 : i32
    %c0_6 = arith.constant 0 : index
    %10 = arith.index_cast %9 : i32 to index
    %11 = vector.load %arg4[%c0_6, %10] : memref<1x1024xf32, #tpu.memory_space<vmem>>, vector<1x1024xf32>
    %12 = vector.broadcast %11 : vector<1x1024xf32> to vector<2x1024xf32>
    %13 = arith.addf %7, %12 : vector<2x1024xf32>
    %cst_7 = arith.constant 0.000000e+00 : f32
    %14 = vector.broadcast %cst_7 : f32 to vector<2x1024xf32>
    %15 = arith.maximumf %13, %14 : vector<2x1024xf32>
    %16 = math.log1p %15 : vector<2x1024xf32>
    %c0_8 = arith.constant 0 : index
    %c0_9 = arith.constant 0 : index
    %17 = vector.load %arg5[%c0_8, %c0_9] : memref<2x1024xf32, #tpu.memory_space<vmem>>, vector<2x1024xf32>
    tpu.vector_store %arg5[%c0_8, %c0_9], %16 {strides = array<i32>} : memref<2x1024xf32, #tpu.memory_space<vmem>>, vector<2x1024xf32>,
    return
  }
  func.func @transform_0(%arg0: i32) -> (i32, i32) {
    %c0_i32 = arith.constant 0 : i32
    %c0_i32_0 = arith.constant 0 : i32
    %c0_i32_1 = arith.constant 0 : i32
    return %c0_i32, %c0_i32_0 : i32, i32
  }
  func.func @transform_1(%arg0: i32) -> (i32, i32) {
    %c0_i32 = arith.constant 0 : i32
    %c0_i32_0 = arith.constant 0 : i32
    %c0_i32_1 = arith.constant 0 : i32
    return %c0_i32, %c0_i32_0 : i32, i32
  }
  func.func @transform_2(%arg0: i32) -> (i32, i32) {
    %c0_i32 = arith.constant 0 : i32
    %c0_i32_0 = arith.constant 0 : i32
    return %c0_i32, %arg0 : i32, i32
  }
  func.func @transform_3(%arg0: i32) -> (i32, i32) {
    %c0_i32 = arith.constant 0 : i32
    %c0_i32_0 = arith.constant 0 : i32
    %c0_i32_1 = arith.constant 0 : i32
    return %c0_i32, %c0_i32_0 : i32, i32
  }
  func.func @transform_4(%arg0: i32) -> (i32, i32) {
    %c0_i32 = arith.constant 0 : i32
    %c0_i32_0 = arith.constant 0 : i32
    return %c0_i32, %arg0 : i32, i32
  }
}

</mosaic_0001>

<llo_original>
// kernel: splade_forward.1
$region0: #{splade_forward.1}
  #allocation0 [shape = 'u32[]', space=smem, size = 0x4, offset = 0x4, fixed_abs, tag = 'smem constant byte address 0x4 - core index']
  #allocation1 [shape = 'u32[72,128]{1,0:T(1,128)}', space=vmem, size = 0x9000, scoped, tag = 'internal scratch']
  %s0 = inlined_call_operand.vmem [shape: f32[16,128], index: 0, kind: input, shape index: {}]
  %s1 = inlined_call_operand.vmem [shape: f32[16,1], index: 1, kind: input, shape index: {}]
  %s2 = inlined_call_operand.vmem [shape: f32[128,1024], index: 2, kind: input, shape index: {}]
  %s3 = inlined_call_operand.vmem [shape: f32[1,1024], index: 3, kind: input, shape index: {}]
  %s4 = inlined_call_operand.vmem [shape: f32[2,1024], index: 4, kind: output, shape index: {}]
  %s5 = sld [smem:[#allocation0]]
  $region26: #{splade_forward.1} parent=0
    _
  %s7 = ssub.s32 1, %s5
  %s8 = scalar_select 0, %s7, %s5
  // Predicated region
  $region2: #{splade_forward.1} parent=0 // pred_check
    _
  $region3: #{splade_forward.1} parent=0 // pred_check_branch
    %10 = sbr.rel (0) target = $region5
  $region4: #{splade_forward.1} parent=0 // pred_region
    _
  $region5: #{splade_forward.1} parent=0 // pred_fallthru
    _
  // Predicated region
  $region6: #{splade_forward.1} parent=0 // pred_check
    _
  $region7: #{splade_forward.1} parent=0 // pred_check_branch
    %12 = sbr.rel (0) target = $region9
  $region8: #{splade_forward.1} parent=0 // pred_region
    _
  $region9: #{splade_forward.1} parent=0 // pred_fallthru
    _
  // Predicated region
  $region10: #{splade_forward.1} parent=0 // pred_check
    _
  $region11: #{splade_forward.1} parent=0 // pred_check_branch
    %14 = sbr.rel (0) target = $region13
  $region12: #{splade_forward.1} parent=0 // pred_region
    _
  $region13: #{splade_forward.1} parent=0 // pred_fallthru
    _
  // Predicated region
  $region14: #{splade_forward.1} parent=0 // pred_check
    _
  $region15: #{splade_forward.1} parent=0 // pred_check_branch
    %16 = sbr.rel (0) target = $region17
  $region16: #{splade_forward.1} parent=0 // pred_region
    _
  $region17: #{splade_forward.1} parent=0 // pred_fallthru
    _
  %v17 = vld [vmem:[%s0] sm:$0xff]
  %v18 = vld [vmem:[%s0 + $0x8] sm:$0xff]
  %v19 = vld [vmem:[%s2] sm:$0xff]
  %v20 = vld [vmem:[%s2 + $0x8] sm:$0xff]
  %v21 = vld [vmem:[%s2 + $0x10] sm:$0xff]
  %v22 = vld [vmem:[%s2 + $0x18] sm:$0xff]
  %v23 = vld [vmem:[%s2 + $0x20] sm:$0xff]
  %v24 = vld [vmem:[%s2 + $0x28] sm:$0xff]
  %v25 = vld [vmem:[%s2 + $0x30] sm:$0xff]
  %v26 = vld [vmem:[%s2 + $0x38] sm:$0xff]
  %v27 = vld [vmem:[%s2 + $0x40] sm:$0xff]
  %v28 = vld [vmem:[%s2 + $0x48] sm:$0xff]
  %v29 = vld [vmem:[%s2 + $0x50] sm:$0xff]
  %v30 = vld [vmem:[%s2 + $0x58] sm:$0xff]
  %v31 = vld [vmem:[%s2 + $0x60] sm:$0xff]
  %v32 = vld [vmem:[%s2 + $0x68] sm:$0xff]
  %v33 = vld [vmem:[%s2 + $0x70] sm:$0xff]
  %v34 = vld [vmem:[%s2 + $0x78] sm:$0xff]
  %v35 = vld [vmem:[%s2 + $0x80] sm:$0xff]
  %v36 = vld [vmem:[%s2 + $0x88] sm:$0xff]
  %v37 = vld [vmem:[%s2 + $0x90] sm:$0xff]
  %v38 = vld [vmem:[%s2 + $0x98] sm:$0xff]
  %v39 = vld [vmem:[%s2 + $0xa0] sm:$0xff]
  %v40 = vld [vmem:[%s2 + $0xa8] sm:$0xff]
  %v41 = vld [vmem:[%s2 + $0xb0] sm:$0xff]
  %v42 = vld [vmem:[%s2 + $0xb8] sm:$0xff]
  %v43 = vld [vmem:[%s2 + $0xc0] sm:$0xff]
  %v44 = vld [vmem:[%s2 + $0xc8] sm:$0xff]
  %v45 = vld [vmem:[%s2 + $0xd0] sm:$0xff]
  %v46 = vld [vmem:[%s2 + $0xd8] sm:$0xff]
  %v47 = vld [vmem:[%s2 + $0xe0] sm:$0xff]
  %v48 = vld [vmem:[%s2 + $0xe8] sm:$0xff]
  %v49 = vld [vmem:[%s2 + $0xf0] sm:$0xff]
  %v50 = vld [vmem:[%s2 + $0xf8] sm:$0xff]
  %v51 = vld [vmem:[%s2 + $0x100] sm:$0xff]
  %v52 = vld [vmem:[%s2 + $0x108] sm:$0xff]
  %v53 = vld [vmem:[%s2 + $0x110] sm:$0xff]
  %v54 = vld [vmem:[%s2 + $0x118] sm:$0xff]
  %v55 = vld [vmem:[%s2 + $0x120] sm:$0xff]
  %v56 = vld [vmem:[%s2 + $0x128] sm:$0xff]
  %v57 = vld [vmem:[%s2 + $0x130] sm:$0xff]
  %v58 = vld [vmem:[%s2 + $0x138] sm:$0xff]
  %v59 = vld [vmem:[%s2 + $0x140] sm:$0xff]
  %v60 = vld [vmem:[%s2 + $0x148] sm:$0xff]
  %v61 = vld [vmem:[%s2 + $0x150] sm:$0xff]
  %v62 = vld [vmem:[%s2 + $0x158] sm:$0xff]
  %v63 = vld [vmem:[%s2 + $0x160] sm:$0xff]
  %v64 = vld [vmem:[%s2 + $0x168] sm:$0xff]
  %v65 = vld [vmem:[%s2 + $0x170] sm:$0xff]
  %v66 = vld [vmem:[%s2 + $0x178] sm:$0xff]
  %v67 = vld [vmem:[%s2 + $0x180] sm:$0xff]
  %v68 = vld [vmem:[%s2 + $0x188] sm:$0xff]
  %v69 = vld [vmem:[%s2 + $0x190] sm:$0xff]
  %v70 = vld [vmem:[%s2 + $0x198] sm:$0xff]
  %v71 = vld [vmem:[%s2 + $0x1a0] sm:$0xff]
  %v72 = vld [vmem:[%s2 + $0x1a8] sm:$0xff]
  %v73 = vld [vmem:[%s2 + $0x1b0] sm:$0xff]
  %v74 = vld [vmem:[%s2 + $0x1b8] sm:$0xff]
  %v75 = vld [vmem:[%s2 + $0x1c0] sm:$0xff]
  %v76 = vld [vmem:[%s2 + $0x1c8] sm:$0xff]
  %v77 = vld [vmem:[%s2 + $0x1d0] sm:$0xff]
  %v78 = vld [vmem:[%s2 + $0x1d8] sm:$0xff]
  %v79 = vld [vmem:[%s2 + $0x1e0] sm:$0xff]
  %v80 = vld [vmem:[%s2 + $0x1e8] sm:$0xff]
  %v81 = vld [vmem:[%s2 + $0x1f0] sm:$0xff]
  %v82 = vld [vmem:[%s2 + $0x1f8] sm:$0xff]
  %v83 = vld [vmem:[%s2 + $0x200] sm:$0xff]
  %v84 = vld [vmem:[%s2 + $0x208] sm:$0xff]
  %v85 = vld [vmem:[%s2 + $0x210] sm:$0xff]
  %v86 = vld [vmem:[%s2 + $0x218] sm:$0xff]
  %v87 = vld [vmem:[%s2 + $0x220] sm:$0xff]
  %v88 = vld [vmem:[%s2 + $0x228] sm:$0xff]
  %v89 = vld [vmem:[%s2 + $0x230] sm:$0xff]
  %v90 = vld [vmem:[%s2 + $0x238] sm:$0xff]
  %v91 = vld [vmem:[%s2 + $0x240] sm:$0xff]
  %v92 = vld [vmem:[%s2 + $0x248] sm:$0xff]
  %v93 = vld [vmem:[%s2 + $0x250] sm:$0xff]
  %v94 = vld [vmem:[%s2 + $0x258] sm:$0xff]
  %v95 = vld [vmem:[%s2 + $0x260] sm:$0xff]
  %v96 = vld [vmem:[%s2 + $0x268] sm:$0xff]
  %v97 = vld [vmem:[%s2 + $0x270] sm:$0xff]
  %v98 = vld [vmem:[%s2 + $0x278] sm:$0xff]
  %v99 = vld [vmem:[%s2 + $0x280] sm:$0xff]
  %v100 = vld [vmem:[%s2 + $0x288] sm:$0xff]
  %v101 = vld [vmem:[%s2 + $0x290] sm:$0xff]
  %v102 = vld [vmem:[%s2 + $0x298] sm:$0xff]
  %v103 = vld [vmem:[%s2 + $0x2a0] sm:$0xff]
  %v104 = vld [vmem:[%s2 + $0x2a8] sm:$0xff]
  %v105 = vld [vmem:[%s2 + $0x2b0] sm:$0xff]
  %v106 = vld [vmem:[%s2 + $0x2b8] sm:$0xff]
  %v107 = vld [vmem:[%s2 + $0x2c0] sm:$0xff]
  %v108 = vld [vmem:[%s2 + $0x2c8] sm:$0xff]
  %v109 = vld [vmem:[%s2 + $0x2d0] sm:$0xff]
  %v110 = vld [vmem:[%s2 + $0x2d8] sm:$0xff]
  %v111 = vld [vmem:[%s2 + $0x2e0] sm:$0xff]
  %v112 = vld [vmem:[%s2 + $0x2e8] sm:$0xff]
  %v113 = vld [vmem:[%s2 + $0x2f0] sm:$0xff]
  %v114 = vld [vmem:[%s2 + $0x2f8] sm:$0xff]
  %v115 = vld [vmem:[%s2 + $0x300] sm:$0xff]
  %v116 = vld [vmem:[%s2 + $0x308] sm:$0xff]
  %v117 = vld [vmem:[%s2 + $0x310] sm:$0xff]
  %v118 = vld [vmem:[%s2 + $0x318] sm:$0xff]
  %v119 = vld [vmem:[%s2 + $0x320] sm:$0xff]
  %v120 = vld [vmem:[%s2 + $0x328] sm:$0xff]
  %v121 = vld [vmem:[%s2 + $0x330] sm:$0xff]
  %v122 = vld [vmem:[%s2 + $0x338] sm:$0xff]
  %v123 = vld [vmem:[%s2 + $0x340] sm:$0xff]
  %v124 = vld [vmem:[%s2 + $0x348] sm:$0xff]
  %v125 = vld [vmem:[%s2 + $0x350] sm:$0xff]
  %v126 = vld [vmem:[%s2 + $0x358] sm:$0xff]
  %v127 = vld [vmem:[%s2 + $0x360] sm:$0xff]
  %v128 = vld [vmem:[%s2 + $0x368] sm:$0xff]
  %v129 = vld [vmem:[%s2 + $0x370] sm:$0xff]
  %v130 = vld [vmem:[%s2 + $0x378] sm:$0xff]
  %v131 = vld [vmem:[%s2 + $0x380] sm:$0xff]
  %v132 = vld [vmem:[%s2 + $0x388] sm:$0xff]
  %v133 = vld [vmem:[%s2 + $0x390] sm:$0xff]
  %v134 = vld [vmem:[%s2 + $0x398] sm:$0xff]
  %v135 = vld [vmem:[%s2 + $0x3a0] sm:$0xff]
  %v136 = vld [vmem:[%s2 + $0x3a8] sm:$0xff]
  %v137 = vld [vmem:[%s2 + $0x3b0] sm:$0xff]
  %v138 = vld [vmem:[%s2 + $0x3b8] sm:$0xff]
  %v139 = vld [vmem:[%s2 + $0x3c0] sm:$0xff]
  %v140 = vld [vmem:[%s2 + $0x3c8] sm:$0xff]
  %v141 = vld [vmem:[%s2 + $0x3d0] sm:$0xff]
  %v142 = vld [vmem:[%s2 + $0x3d8] sm:$0xff]
  %v143 = vld [vmem:[%s2 + $0x3e0] sm:$0xff]
  %v144 = vld [vmem:[%s2 + $0x3e8] sm:$0xff]
  %v145 = vld [vmem:[%s2 + $0x3f0] sm:$0xff]
  %v146 = vld [vmem:[%s2 + $0x3f8] sm:$0xff]
  %v147 = vld [vmem:[%s1] sm:$0xff]
  %v148 = vld [vmem:[%s1 + $0x8] sm:$0xff]
  %150 = vset.pattern.permute.xlu0 0
  %151 = vperm.xlu0 %150, %v147
  %v152 = vpop.permute.xlu0 %151
  %155 = vset.pattern.permute.xlu0 0
  %156 = vperm.xlu0 %155, %v148
  %v157 = vpop.permute.xlu0 %156
  %159 = vmatpush.msra.mxu0 %v139
  %160 = vmatpush.msra.mxu0 %v131
  %161 = vmatpush.msra.mxu0 %v123
  %162 = vmatpush.msra.mxu0 %v115
  %163 = vmatpush.msra.mxu0 %v107
  %164 = vmatpush.msra.mxu0 %v99
  %165 = vmatpush.msra.mxu0 %v91
  %166 = vmatpush.msra.mxu0 %v83
  %167 = vmatpush.msra.mxu0 %v75
  %168 = vmatpush.msra.mxu0 %v67
  %169 = vmatpush.msra.mxu0 %v59
  %170 = vmatpush.msra.mxu0 %v51
  %171 = vmatpush.msra.mxu0 %v43
  %172 = vmatpush.msra.mxu0 %v35
  %173 = vmatpush.msra.mxu0 %v27
  %174 = vmatpush.msra.mxu0 %v19
  %175 = vmatmul.f32.gmra.mxu0 %v17
  %v176 = vpop.f32.mrf.mxu0
  %v177 = vadd.f32 %v152, %v176
  %178 = vmatmul.f32.gmra.mxu0 %v18
  %v179 = vpop.f32.mrf.mxu0
  %v180 = vadd.f32 %v157, %v179
  %181 = vdwg.mxu0
  %182 = vmatpush.msra.mxu0 %v140
  %183 = vmatpush.msra.mxu0 %v132
  %184 = vmatpush.msra.mxu0 %v124
  %185 = vmatpush.msra.mxu0 %v116
  %186 = vmatpush.msra.mxu0 %v108
  %187 = vmatpush.msra.mxu0 %v100
  %188 = vmatpush.msra.mxu0 %v92
  %189 = vmatpush.msra.mxu0 %v84
  %190 = vmatpush.msra.mxu0 %v76
  %191 = vmatpush.msra.mxu0 %v68
  %192 = vmatpush.msra.mxu0 %v60
  %193 = vmatpush.msra.mxu0 %v52
  %194 = vmatpush.msra.mxu0 %v44
  %195 = vmatpush.msra.mxu0 %v36
  %196 = vmatpush.msra.mxu0 %v28
  %197 = vmatpush.msra.mxu0 %v20
  %198 = vmatmul.f32.gmra.mxu0 %v17
  %v199 = vpop.f32.mrf.mxu0
  %v200 = vadd.f32 %v152, %v199
  %201 = vmatmul.f32.gmra.mxu0 %v18
  %v202 = vpop.f32.mrf.mxu0
  %v203 = vadd.f32 %v157, %v202
  %204 = vdwg.mxu0
  %205 = vmatpush.msra.mxu0 %v141
  %206 = vmatpush.msra.mxu0 %v133
  %207 = vmatpush.msra.mxu0 %v125
  %208 = vmatpush.msra.mxu0 %v117
  %209 = vmatpush.msra.mxu0 %v109
  %210 = vmatpush.msra.mxu0 %v101
  %211 = vmatpush.msra.mxu0 %v93
  %212 = vmatpush.msra.mxu0 %v85
  %213 = vmatpush.msra.mxu0 %v77
  %214 = vmatpush.msra.mxu0 %v69
  %215 = vmatpush.msra.mxu0 %v61
  %216 = vmatpush.msra.mxu0 %v53
  %217 = vmatpush.msra.mxu0 %v45
  %218 = vmatpush.msra.mxu0 %v37
  %219 = vmatpush.msra.mxu0 %v29
  %220 = vmatpush.msra.mxu0 %v21
  %221 = vmatmul.f32.gmra.mxu0 %v17
  %v222 = vpop.f32.mrf.mxu0
  %v223 = vadd.f32 %v152, %v222
  %224 = vmatmul.f32.gmra.mxu0 %v18
  %v225 = vpop.f32.mrf.mxu0
  %v226 = vadd.f32 %v157, %v225
  %227 = vdwg.mxu0
  %228 = vmatpush.msra.mxu0 %v142
  %229 = vmatpush.msra.mxu0 %v134
  %230 = vmatpush.msra.mxu0 %v126
  %231 = vmatpush.msra.mxu0 %v118
  %232 = vmatpush.msra.mxu0 %v110
  %233 = vmatpush.msra.mxu0 %v102
  %234 = vmatpush.msra.mxu0 %v94
  %235 = vmatpush.msra.mxu0 %v86
  %236 = vmatpush.msra.mxu0 %v78
  %237 = vmatpush.msra.mxu0 %v70
  %238 = vmatpush.msra.mxu0 %v62
  %239 = vmatpush.msra.mxu0 %v54
  %240 = vmatpush.msra.mxu0 %v46
  %241 = vmatpush.msra.mxu0 %v38
  %242 = vmatpush.msra.mxu0 %v30
  %243 = vmatpush.msra.mxu0 %v22
  %244 = vmatmul.f32.gmra.mxu0 %v17
  %v245 = vpop.f32.mrf.mxu0
  %v246 = vadd.f32 %v152, %v245
  %247 = vmatmul.f32.gmra.mxu0 %v18
  %v248 = vpop.f32.mrf.mxu0
  %v249 = vadd.f32 %v157, %v248
  %250 = vdwg.mxu0
  %251 = vmatpush.msra.mxu0 %v143
  %252 = vmatpush.msra.mxu0 %v135
  %253 = vmatpush.msra.mxu0 %v127
  %254 = vmatpush.msra.mxu0 %v119
  %255 = vmatpush.msra.mxu0 %v111
  %256 = vmatpush.msra.mxu0 %v103
  %257 = vmatpush.msra.mxu0 %v95
  %258 = vmatpush.msra.mxu0 %v87
  %259 = vmatpush.msra.mxu0 %v79
  %260 = vmatpush.msra.mxu0 %v71
  %261 = vmatpush.msra.mxu0 %v63
  %262 = vmatpush.msra.mxu0 %v55
  %263 = vmatpush.msra.mxu0 %v47
  %264 = vmatpush.msra.mxu0 %v39
  %265 = vmatpush.msra.mxu0 %v31
  %266 = vmatpush.msra.mxu0 %v23
  %267 = vmatmul.f32.gmra.mxu0 %v17
  %v268 = vpop.f32.mrf.mxu0
  %v269 = vadd.f32 %v152, %v268
  %270 = vmatmul.f32.gmra.mxu0 %v18
  %v271 = vpop.f32.mrf.mxu0
  %v272 = vadd.f32 %v157, %v271
  %273 = vdwg.mxu0
  %274 = vmatpush.msra.mxu0 %v144
  %275 = vmatpush.msra.mxu0 %v136
  %276 = vmatpush.msra.mxu0 %v128
  %277 = vmatpush.msra.mxu0 %v120
  %278 = vmatpush.msra.mxu0 %v112
  %279 = vmatpush.msra.mxu0 %v104
  %280 = vmatpush.msra.mxu0 %v96
  %281 = vmatpush.msra.mxu0 %v88
  %282 = vmatpush.msra.mxu0 %v80
  %283 = vmatpush.msra.mxu0 %v72
  %284 = vmatpush.msra.mxu0 %v64
  %285 = vmatpush.msra.mxu0 %v56
  %286 = vmatpush.msra.mxu0 %v48
  %287 = vmatpush.msra.mxu0 %v40
  %288 = vmatpush.msra.mxu0 %v32
  %289 = vmatpush.msra.mxu0 %v24
  %290 = vmatmul.f32.gmra.mxu0 %v17
  %v291 = vpop.f32.mrf.mxu0
  %v292 = vadd.f32 %v152, %v291
  %293 = vmatmul.f32.gmra.mxu0 %v18
  %v294 = vpop.f32.mrf.mxu0
  %v295 = vadd.f32 %v157, %v294
  %296 = vdwg.mxu0
  %297 = vmatpush.msra.mxu0 %v145
  %298 = vmatpush.msra.mxu0 %v137
  %299 = vmatpush.msra.mxu0 %v129
  %300 = vmatpush.msra.mxu0 %v121
  %301 = vmatpush.msra.mxu0 %v113
  %302 = vmatpush.msra.mxu0 %v105
  %303 = vmatpush.msra.mxu0 %v97
  %304 = vmatpush.msra.mxu0 %v89
  %305 = vmatpush.msra.mxu0 %v81
  %306 = vmatpush.msra.mxu0 %v73
  %307 = vmatpush.msra.mxu0 %v65
  %308 = vmatpush.msra.mxu0 %v57
  %309 = vmatpush.msra.mxu0 %v49
  %310 = vmatpush.msra.mxu0 %v41
  %311 = vmatpush.msra.mxu0 %v33
  %312 = vmatpush.msra.mxu0 %v25
  %313 = vmatmul.f32.gmra.mxu0 %v17
  %v314 = vpop.f32.mrf.mxu0
  %v315 = vadd.f32 %v152, %v314
  %316 = vmatmul.f32.gmra.mxu0 %v18
  %v317 = vpop.f32.mrf.mxu0
  %v318 = vadd.f32 %v157, %v317
  %319 = vdwg.mxu0
  %320 = vmatpush.msra.mxu0 %v146
  %321 = vmatpush.msra.mxu0 %v138
  %322 = vmatpush.msra.mxu0 %v130
  %323 = vmatpush.msra.mxu0 %v122
  %324 = vmatpush.msra.mxu0 %v114
  %325 = vmatpush.msra.mxu0 %v106
  %326 = vmatpush.msra.mxu0 %v98
  %327 = vmatpush.msra.mxu0 %v90
  %328 = vmatpush.msra.mxu0 %v82
  %329 = vmatpush.msra.mxu0 %v74
  %330 = vmatpush.msra.mxu0 %v66
  %331 = vmatpush.msra.mxu0 %v58
  %332 = vmatpush.msra.mxu0 %v50
  %333 = vmatpush.msra.mxu0 %v42
  %334 = vmatpush.msra.mxu0 %v34
  %335 = vmatpush.msra.mxu0 %v26
  %336 = vmatmul.f32.gmra.mxu0 %v17
  %v337 = vpop.f32.mrf.mxu0
  %v338 = vadd.f32 %v152, %v337
  %339 = vmatmul.f32.gmra.mxu0 %v18
  %v340 = vpop.f32.mrf.mxu0
  %v341 = vadd.f32 %v157, %v340
  %342 = vdwg.mxu0
  %v343 = vrot.slane %v177, 4
  %v344 = vmax.f32 %v177, %v343
  %v345 = vrot.slane %v344, 2
  %v346 = vmax.f32 %v344, %v345
  %v347 = vrot.slane %v346, 1
  %v348 = vmax.f32 %v346, %v347
  %v349 = vrot.slane %v200, 4
  %v350 = vmax.f32 %v200, %v349
  %v351 = vrot.slane %v350, 2
  %v352 = vmax.f32 %v350, %v351
  %v353 = vrot.slane %v352, 1
  %v354 = vmax.f32 %v352, %v353
  %v355 = vrot.slane %v223, 4
  %v356 = vmax.f32 %v223, %v355
  %v357 = vrot.slane %v356, 2
  %v358 = vmax.f32 %v356, %v357
  %v359 = vrot.slane %v358, 1
  %v360 = vmax.f32 %v358, %v359
  %v361 = vrot.slane %v246, 4
  %v362 = vmax.f32 %v246, %v361
  %v363 = vrot.slane %v362, 2
  %v364 = vmax.f32 %v362, %v363
  %v365 = vrot.slane %v364, 1
  %v366 = vmax.f32 %v364, %v365
  %v367 = vrot.slane %v269, 4
  %v368 = vmax.f32 %v269, %v367
  %v369 = vrot.slane %v368, 2
  %v370 = vmax.f32 %v368, %v369
  %v371 = vrot.slane %v370, 1
  %v372 = vmax.f32 %v370, %v371
  %v373 = vrot.slane %v292, 4
  %v374 = vmax.f32 %v292, %v373
  %v375 = vrot.slane %v374, 2
  %v376 = vmax.f32 %v374, %v375
  %v377 = vrot.slane %v376, 1
  %v378 = vmax.f32 %v376, %v377
  %v379 = vrot.slane %v315, 4
  %v380 = vmax.f32 %v315, %v379
  %v381 = vrot.slane %v380, 2
  %v382 = vmax.f32 %v380, %v381
  %v383 = vrot.slane %v382, 1
  %v384 = vmax.f32 %v382, %v383
  %v385 = vrot.slane %v338, 4
  %v386 = vmax.f32 %v338, %v385
  %v387 = vrot.slane %v386, 2
  %v388 = vmax.f32 %v386, %v387
  %v389 = vrot.slane %v388, 1
  %v390 = vmax.f32 %v388, %v389
  %v391 = vrot.slane %v180, 4
  %v392 = vmax.f32 %v180, %v391
  %v393 = vrot.slane %v392, 2
  %v394 = vmax.f32 %v392, %v393
  %v395 = vrot.slane %v394, 1
  %v396 = vmax.f32 %v394, %v395
  %v397 = vrot.slane %v203, 4
  %v398 = vmax.f32 %v203, %v397
  %v399 = vrot.slane %v398, 2
  %v400 = vmax.f32 %v398, %v399
  %v401 = vrot.slane %v400, 1
  %v402 = vmax.f32 %v400, %v401
  %v403 = vrot.slane %v226, 4
  %v404 = vmax.f32 %v226, %v403
  %v405 = vrot.slane %v404, 2
  %v406 = vmax.f32 %v404, %v405
  %v407 = vrot.slane %v406, 1
  %v408 = vmax.f32 %v406, %v407
  %v409 = vrot.slane %v249, 4
  %v410 = vmax.f32 %v249, %v409
  %v411 = vrot.slane %v410, 2
  %v412 = vmax.f32 %v410, %v411
  %v413 = vrot.slane %v412, 1
  %v414 = vmax.f32 %v412, %v413
  %v415 = vrot.slane %v272, 4
  %v416 = vmax.f32 %v272, %v415
  %v417 = vrot.slane %v416, 2
  %v418 = vmax.f32 %v416, %v417
  %v419 = vrot.slane %v418, 1
  %v420 = vmax.f32 %v418, %v419
  %v421 = vrot.slane %v295, 4
  %v422 = vmax.f32 %v295, %v421
  %v423 = vrot.slane %v422, 2
  %v424 = vmax.f32 %v422, %v423
  %v425 = vrot.slane %v424, 1
  %v426 = vmax.f32 %v424, %v425
  %v427 = vrot.slane %v318, 4
  %v428 = vmax.f32 %v318, %v427
  %v429 = vrot.slane %v428, 2
  %v430 = vmax.f32 %v428, %v429
  %v431 = vrot.slane %v430, 1
  %v432 = vmax.f32 %v430, %v431
  %v433 = vrot.slane %v341, 4
  %v434 = vmax.f32 %v341, %v433
  %v435 = vrot.slane %v434, 2
  %v436 = vmax.f32 %v434, %v435
  %v437 = vrot.slane %v436, 1
  %v438 = vmax.f32 %v436, %v437
  %s439 = smul.u32 0, 1024
  %s440 = sshra.s32 %s439, 7
  %s441 = sand.u32 %s439, 127
  %s442 = scalar_lea.vmem %s3, %s440
  %v443 = vld [vmem:[%s442] sm:$0xff]
  %v445 = vperm.slane %v443, 0
  %v446 = vperm.slane %v443, 1
  %v447 = vperm.slane %v443, 2
  %v448 = vperm.slane %v443, 3
  %v449 = vperm.slane %v443, 4
  %v450 = vperm.slane %v443, 5
  %v451 = vperm.slane %v443, 6
  %v452 = vperm.slane %v443, 7
  %v461 = vadd.f32 %v348, %v445
  %v462 = vadd.f32 %v354, %v446
  %v463 = vadd.f32 %v360, %v447
  %v464 = vadd.f32 %v366, %v448
  %v465 = vadd.f32 %v372, %v449
  %v466 = vadd.f32 %v378, %v450
  %v467 = vadd.f32 %v384, %v451
  %v468 = vadd.f32 %v390, %v452
  %v469 = vadd.f32 %v396, %v445
  %v470 = vadd.f32 %v402, %v446
  %v471 = vadd.f32 %v408, %v447
  %v472 = vadd.f32 %v414, %v448
  %v473 = vadd.f32 %v420, %v449
  %v474 = vadd.f32 %v426, %v450
  %v475 = vadd.f32 %v432, %v451
  %v476 = vadd.f32 %v438, %v452
  %v477 = vmax.f32 %v461, 0.0
  %v478 = vmax.f32 %v462, 0.0
  %v479 = vmax.f32 %v463, 0.0
  %v480 = vmax.f32 %v464, 0.0
  %v481 = vmax.f32 %v465, 0.0
  %v482 = vmax.f32 %v466, 0.0
  %v483 = vmax.f32 %v467, 0.0
  %v484 = vmax.f32 %v468, 0.0
  %v485 = vmax.f32 %v469, 0.0
  %v486 = vmax.f32 %v470, 0.0
  %v487 = vmax.f32 %v471, 0.0
  %v488 = vmax.f32 %v472, 0.0
  %v489 = vmax.f32 %v473, 0.0
  %v490 = vmax.f32 %v474, 0.0
  %v491 = vmax.f32 %v475, 0.0
  %v492 = vmax.f32 %v476, 0.0
  %v493 = vadd.f32 %v477, 1.0
  %v494 = vlog2.pop %v493
  %v495 = vmul.f32 %v494, 0.6931472
  %v496 = vmul.f32 -0.5, %v477
  %v497 = vadd.f32 %v496, 1.0
  %v498 = vmul.f32 %v497, %v477
  %v499 = vand.u32 2147483647, %v477
  %vm500 = vcmp.lt.f32.partialorder %v499, 0.0004427343
  %v501 = vsel %vm500, %v498, %v495
  %v502 = vadd.f32 %v478, 1.0
  %v503 = vlog2.pop %v502
  %v504 = vmul.f32 %v503, 0.6931472
  %v505 = vmul.f32 -0.5, %v478
  %v506 = vadd.f32 %v505, 1.0
  %v507 = vmul.f32 %v506, %v478
  %v508 = vand.u32 2147483647, %v478
  %vm509 = vcmp.lt.f32.partialorder %v508, 0.0004427343
  %v510 = vsel %vm509, %v507, %v504
  %v511 = vadd.f32 %v479, 1.0
  %v512 = vlog2.pop %v511
  %v513 = vmul.f32 %v512, 0.6931472
  %v514 = vmul.f32 -0.5, %v479
  %v515 = vadd.f32 %v514, 1.0
  %v516 = vmul.f32 %v515, %v479
  %v517 = vand.u32 2147483647, %v479
  %vm518 = vcmp.lt.f32.partialorder %v517, 0.0004427343
  %v519 = vsel %vm518, %v516, %v513
  %v520 = vadd.f32 %v480, 1.0
  %v521 = vlog2.pop %v520
  %v522 = vmul.f32 %v521, 0.6931472
  %v523 = vmul.f32 -0.5, %v480
  %v524 = vadd.f32 %v523, 1.0
  %v525 = vmul.f32 %v524, %v480
  %v526 = vand.u32 2147483647, %v480
  %vm527 = vcmp.lt.f32.partialorder %v526, 0.0004427343
  %v528 = vsel %vm527, %v525, %v522
  %v529 = vadd.f32 %v481, 1.0
  %v530 = vlog2.pop %v529
  %v531 = vmul.f32 %v530, 0.6931472
  %v532 = vmul.f32 -0.5, %v481
  %v533 = vadd.f32 %v532, 1.0
  %v534 = vmul.f32 %v533, %v481
  %v535 = vand.u32 2147483647, %v481
  %vm536 = vcmp.lt.f32.partialorder %v535, 0.0004427343
  %v537 = vsel %vm536, %v534, %v531
  %v538 = vadd.f32 %v482, 1.0
  %v539 = vlog2.pop %v538
  %v540 = vmul.f32 %v539, 0.6931472
  %v541 = vmul.f32 -0.5, %v482
  %v542 = vadd.f32 %v541, 1.0
  %v543 = vmul.f32 %v542, %v482
  %v544 = vand.u32 2147483647, %v482
  %vm545 = vcmp.lt.f32.partialorder %v544, 0.0004427343
  %v546 = vsel %vm545, %v543, %v540
  %v547 = vadd.f32 %v483, 1.0
  %v548 = vlog2.pop %v547
  %v549 = vmul.f32 %v548, 0.6931472
  %v550 = vmul.f32 -0.5, %v483
  %v551 = vadd.f32 %v550, 1.0
  %v552 = vmul.f32 %v551, %v483
  %v553 = vand.u32 2147483647, %v483
  %vm554 = vcmp.lt.f32.partialorder %v553, 0.0004427343
  %v555 = vsel %vm554, %v552, %v549
  %v556 = vadd.f32 %v484, 1.0
  %v557 = vlog2.pop %v556
  %v558 = vmul.f32 %v557, 0.6931472
  %v559 = vmul.f32 -0.5, %v484
  %v560 = vadd.f32 %v559, 1.0
  %v561 = vmul.f32 %v560, %v484
  %v562 = vand.u32 2147483647, %v484
  %vm563 = vcmp.lt.f32.partialorder %v562, 0.0004427343
  %v564 = vsel %vm563, %v561, %v558
  %v565 = vadd.f32 %v485, 1.0
  %v566 = vlog2.pop %v565
  %v567 = vmul.f32 %v566, 0.6931472
  %v568 = vmul.f32 -0.5, %v485
  %v569 = vadd.f32 %v568, 1.0
  %v570 = vmul.f32 %v569, %v485
  %v571 = vand.u32 2147483647, %v485
  %vm572 = vcmp.lt.f32.partialorder %v571, 0.0004427343
  %v573 = vsel %vm572, %v570, %v567
  %v574 = vadd.f32 %v486, 1.0
  %v575 = vlog2.pop %v574
  %v576 = vmul.f32 %v575, 0.6931472
  %v577 = vmul.f32 -0.5, %v486
  %v578 = vadd.f32 %v577, 1.0
  %v579 = vmul.f32 %v578, %v486
  %v580 = vand.u32 2147483647, %v486
  %vm581 = vcmp.lt.f32.partialorder %v580, 0.0004427343
  %v582 = vsel %vm581, %v579, %v576
  %v583 = vadd.f32 %v487, 1.0
  %v584 = vlog2.pop %v583
  %v585 = vmul.f32 %v584, 0.6931472
  %v586 = vmul.f32 -0.5, %v487
  %v587 = vadd.f32 %v586, 1.0
  %v588 = vmul.f32 %v587, %v487
  %v589 = vand.u32 2147483647, %v487
  %vm590 = vcmp.lt.f32.partialorder %v589, 0.0004427343
  %v591 = vsel %vm590, %v588, %v585
  %v592 = vadd.f32 %v488, 1.0
  %v593 = vlog2.pop %v592
  %v594 = vmul.f32 %v593, 0.6931472
  %v595 = vmul.f32 -0.5, %v488
  %v596 = vadd.f32 %v595, 1.0
  %v597 = vmul.f32 %v596, %v488
  %v598 = vand.u32 2147483647, %v488
  %vm599 = vcmp.lt.f32.partialorder %v598, 0.0004427343
  %v600 = vsel %vm599, %v597, %v594
  %v601 = vadd.f32 %v489, 1.0
  %v602 = vlog2.pop %v601
  %v603 = vmul.f32 %v602, 0.6931472
  %v604 = vmul.f32 -0.5, %v489
  %v605 = vadd.f32 %v604, 1.0
  %v606 = vmul.f32 %v605, %v489
  %v607 = vand.u32 2147483647, %v489
  %vm608 = vcmp.lt.f32.partialorder %v607, 0.0004427343
  %v609 = vsel %vm608, %v606, %v603
  %v610 = vadd.f32 %v490, 1.0
  %v611 = vlog2.pop %v610
  %v612 = vmul.f32 %v611, 0.6931472
  %v613 = vmul.f32 -0.5, %v490
  %v614 = vadd.f32 %v613, 1.0
  %v615 = vmul.f32 %v614, %v490
  %v616 = vand.u32 2147483647, %v490
  %vm617 = vcmp.lt.f32.partialorder %v616, 0.0004427343
  %v618 = vsel %vm617, %v615, %v612
  %v619 = vadd.f32 %v491, 1.0
  %v620 = vlog2.pop %v619
  %v621 = vmul.f32 %v620, 0.6931472
  %v622 = vmul.f32 -0.5, %v491
  %v623 = vadd.f32 %v622, 1.0
  %v624 = vmul.f32 %v623, %v491
  %v625 = vand.u32 2147483647, %v491
  %vm626 = vcmp.lt.f32.partialorder %v625, 0.0004427343
  %v627 = vsel %vm626, %v624, %v621
  %v628 = vadd.f32 %v492, 1.0
  %v629 = vlog2.pop %v628
  %v630 = vmul.f32 %v629, 0.6931472
  %v631 = vmul.f32 -0.5, %v492
  %v632 = vadd.f32 %v631, 1.0
  %v633 = vmul.f32 %v632, %v492
  %v634 = vand.u32 2147483647, %v492
  %vm635 = vcmp.lt.f32.partialorder %v634, 0.0004427343
  %v636 = vsel %vm635, %v633, %v630
  %v653 = vrot.slane %v510, 6
  %v654 = vrot.slane %v519, 4
  %v655 = vrot.slane %v528, 2
  %v656 = vrot.slane %v546, 6
  %v657 = vrot.slane %v555, 4
  %v658 = vrot.slane %v564, 2
  %v659 = vrot.slane %v582, 6
  %v660 = vrot.slane %v591, 4
  %v661 = vrot.slane %v600, 2
  %v662 = vrot.slane %v618, 6
  %v663 = vrot.slane %v627, 4
  %v664 = vrot.slane %v636, 2
  %vm665 = vcmask 1041408
  %v666 = vsel %vm665, %v501, %v653
  %vm667 = vcmask 1045508
  %v668 = vsel %vm667, %v654, %v655
  %vm669 = vcmask 1043456
  %v670 = vsel %vm669, %v666, %v668
  %v671 = vsel %vm665, %v537, %v656
  %v672 = vsel %vm667, %v657, %v658
  %v673 = vsel %vm669, %v671, %v672
  %v674 = vsel %vm665, %v573, %v659
  %v675 = vsel %vm667, %v660, %v661
  %v676 = vsel %vm669, %v674, %v675
  %v677 = vsel %vm665, %v609, %v662
  %v678 = vsel %vm667, %v663, %v664
  %v679 = vsel %vm669, %v677, %v678
  %vm680 = vcmask 1044484
  %v681 = vsel %vm680, %v670, %v670
  %vm682 = vcmask 1046534
  %v683 = vsel %vm682, %v670, %v681
  %v684 = vrot.slane %v676, 7
  %vm685 = vcmask 1041409
  %v686 = vsel %vm685, %v684, %v683
  %vm687 = vcmask 1043459
  %v688 = vsel %vm687, %v684, %v686
  %vm689 = vcmask 1045509
  %v690 = vsel %vm689, %v684, %v688
  %vm691 = vcmask 1047559
  %v692 = vsel %vm691, %v684, %v690
  %v693 = vsel %vm680, %v673, %v673
  %v694 = vsel %vm682, %v673, %v693
  %v695 = vrot.slane %v679, 7
  %v696 = vsel %vm685, %v695, %v694
  %v697 = vsel %vm687, %v695, %v696
  %v698 = vsel %vm689, %v695, %v697
  %v699 = vsel %vm691, %v695, %v698
  %702 = vst [vmem:[%s4] sm:$0xff] %v692
  %703 = vst [vmem:[%s4 + $0x8] sm:$0xff] %v699
  // Predicated region
  $region18: #{splade_forward.1} parent=0 // pred_check
    _
  $region19: #{splade_forward.1} parent=0 // pred_check_branch
    %705 = sbr.rel (0) target = $region21
  $region20: #{splade_forward.1} parent=0 // pred_region
    _
  $region21: #{splade_forward.1} parent=0 // pred_fallthru
    _
  // Predicated region
  $region22: #{splade_forward.1} parent=0 // pred_check
    _
  $region23: #{splade_forward.1} parent=0 // pred_check_branch
    %707 = sbr.rel (0) target = $region25
  $region24: #{splade_forward.1} parent=0 // pred_region
    _
  $region25: #{splade_forward.1} parent=0 // pred_fallthru
    _

</llo_original>
